<compile_context>
chip_gen: v7x
topology: tpu7x:2x2x1
jax: 0.10.0
libtpu: 0.0.40
codegen_flags: <defaults>
</compile_context>

<pallas_src>
import functools

import jax
import jax.numpy as jnp
from jax.experimental import pallas as pl
from jax.experimental.pallas import tpu as pltpu


def _round_up(n, m):
    return ((n + m - 1) // m) * m


def _label_smoothing_kernel(x_ref, tgt_ref, out_ref, *,
                            confidence, smoothing, n_valid_rows):
    i = pl.program_id(0)

    x = x_ref[...]                                  # (TB, C), input dtype
    tgt = tgt_ref[...]                              # (TB, 1) int32
    tb, c = x.shape

    # Numerically stable logsumexp pieces; max/sub in the input dtype,
    # cast once for exp / reductions.
    m = jnp.max(x, axis=-1, keepdims=True)                               # (TB, 1)
    shifted = (x - m).astype(jnp.float32)                                # (TB, C)
    lse = jnp.log(jnp.sum(jnp.exp(shifted), axis=-1, keepdims=True))     # (TB, 1)

    # Target logit via select + reduce (no onehot cast / multiply).
    cls_idx = jax.lax.broadcasted_iota(jnp.int32, (tb, c), 1)
    tgt_shifted = jnp.sum(jnp.where(cls_idx == tgt, shifted, 0.0),
                          axis=-1, keepdims=True)                        # (TB, 1)
    sum_shifted = jnp.sum(shifted, axis=-1, keepdims=True)               # (TB, 1)

    # nll    = lse - shifted[target]
    # smooth = lse - mean(shifted)
    loss = (confidence * (lse - tgt_shifted)
            + smoothing * (lse - sum_shifted * (1.0 / c)))               # (TB, 1)

    # Mask rows past the true batch size (ragged tail block reads garbage;
    # where() keeps any NaN/Inf from leaking into the sum).
    row_idx = i * tb + jax.lax.broadcasted_iota(jnp.int32, (tb, 1), 0)
    loss = jnp.where(row_idx < n_valid_rows, loss, 0.0)

    partial = jnp.sum(loss, axis=0, keepdims=True)                       # (1, 1)
    out_ref[...] = jnp.broadcast_to(partial.reshape(1, 1, 1), (1, 8, 128))


def label_smoothing_loss(x, target, smoothing, *, block_rows=None):
    """NLL loss with label smoothing, matching the PyTorch LabelSmoothing module."""
    confidence = 1.0 - smoothing
    b, c = x.shape

    # Sublane tiling depends on input dtype (f32: 8 rows/vreg, bf16: 16).
    sublane = 16 if x.dtype == jnp.bfloat16 else 8
    itemsize = jnp.dtype(x.dtype).itemsize

    # Generation-aware VMEM limit: v5e/v6e (128 MiB physical) -> 64 MiB,
    # v7x (64 MiB physical) -> 48 MiB.
    default_capacity = 64 * 1024 * 1024
    try:
        info = pltpu.get_tpu_info()
        vmem_capacity = getattr(info, "vmem_capacity_bytes", None) or default_capacity
    except Exception:  # pragma: no cover - conservative fallback off-TPU/trace issues
        vmem_capacity = default_capacity
    vmem_limit = int(min(vmem_capacity * 3 // 4, 64 * 1024 * 1024))

    # Per-row working-set bytes:
    #   x block x2 buffers + (TB,1)->(TB,128) int32 target block x2 buffers
    #   + ~4 full-width f32 intermediates (shifted / exp / select / iota).
    bytes_per_row = 2 * c * itemsize + 2 * 128 * 4 + 4 * c * 4
    max_rows_vmem = max(sublane, (vmem_limit // 2) // bytes_per_row)

    # DMA efficiency target: ~4 MiB of x per grid step.
    target_rows = max(sublane, (4 * 1024 * 1024) // (c * itemsize))

    tb = min(target_rows, max_rows_vmem, _round_up(b, sublane))
    if block_rows is not None:
        tb = min(tb, block_rows)
    tb = max(sublane, (tb // sublane) * sublane)

    num_tiles = pl.cdiv(b, tb)

    # x is NOT padded (single HBM pass); only the tiny target vector is padded
    # so its blocks never read out of bounds.
    b_pad = num_tiles * tb
    if b_pad != b:
        target = jnp.pad(target, (0, b_pad - b))
    tgt2d = target.astype(jnp.int32).reshape(b_pad, 1)

    kernel = functools.partial(
        _label_smoothing_kernel,
        confidence=confidence,
        smoothing=smoothing,
        n_valid_rows=b,
    )

    partials = pl.pallas_call(
        kernel,
        out_shape=jax.ShapeDtypeStruct((num_tiles, 8, 128), jnp.float32),
        grid_spec=pltpu.PrefetchScalarGridSpec(
            num_scalar_prefetch=0,
            grid=(num_tiles,),
            in_specs=[
                pl.BlockSpec((tb, c), lambda i: (i, 0)),
                pl.BlockSpec((tb, 1), lambda i: (i, 0)),
            ],
            out_specs=pl.BlockSpec((1, 8, 128), lambda i: (i, 0, 0)),
        ),
        compiler_params=pltpu.CompilerParams(
            dimension_semantics=("parallel",),
            vmem_limit_bytes=vmem_limit,
        ),
    )(x, tgt2d)

    # Tiny final reduction over per-tile partial sums in plain JAX.
    return jnp.sum(partials[:, 0, 0]) / b


def _reference(x, target, smoothing):
    logprobs = jax.nn.log_softmax(x.astype(jnp.float32), axis=-1)
    nll = -jnp.take_along_axis(logprobs, target[:, None], axis=-1)[:, 0]
    smooth = -jnp.mean(logprobs, axis=-1)
    return jnp.mean((1.0 - smoothing) * nll + smoothing * smooth)


if __name__ == "__main__":
    key = jax.random.PRNGKey(0)
    kx, kt = jax.random.split(key)
    smoothing = 0.1

    # Case 1: ragged batch (B % TB != 0) with a forced small tile to exercise
    # the multi-step parallel grid and the in-kernel tail masking (no x pad).
    B, C = 20, 16
    x = jax.random.normal(kx, (B, C), dtype=jnp.float32)
    target = jax.random.randint(kt, (B,), 0, C, dtype=jnp.int32)
    loss = jax.block_until_ready(label_smoothing_loss(x, target, smoothing, block_rows=8))
    ref = _reference(x, target, smoothing)
    assert jnp.allclose(loss, ref, atol=1e-5, rtol=1e-5), (loss, ref)

    # Case 2: default bytes-aware tiling, batch divisible by the tile.
    B2, C2 = 64, 128
    x2 = jax.random.normal(kx, (B2, C2), dtype=jnp.float32)
    target2 = jax.random.randint(kt, (B2,), 0, C2, dtype=jnp.int32)
    loss2 = jax.block_until_ready(label_smoothing_loss(x2, target2, smoothing))
    ref2 = _reference(x2, target2, smoothing)
    assert jnp.allclose(loss2, ref2, atol=1e-5, rtol=1e-5), (loss2, ref2)

    print("KERNEL_OK")
</pallas_src>

<mosaic_0001>
module attributes {stable_mosaic.version = 11 : i64} {
  func.func @_label_smoothing_kernel(%arg0: i32, %arg1: memref<8x16xf32, #tpu.memory_space<vmem>>, %arg2: memref<8x1xi32, #tpu.memory_space<vmem>>, %arg3: memref<1x8x128xf32, #tpu.memory_space<vmem>>) attributes {dimension_semantics = [#tpu.dimension_semantics<parallel>], iteration_bounds = array<i64: 3>, scalar_prefetch = 0 : i64, scratch_operands = 0 : i64, tpu.core_type = #tpu.core_type<tc>, window_params = [{transform_indices = @transform_0, window_bounds = array<i64: 8, 16>}, {transform_indices = @transform_1, window_bounds = array<i64: 8, 1>}, {transform_indices = @transform_2, window_bounds = array<i64: 1, 8, 128>}]} {
    %c0 = arith.constant 0 : index
    %c0_0 = arith.constant 0 : index
    %0 = vector.load %arg1[%c0, %c0_0] : memref<8x16xf32, #tpu.memory_space<vmem>>, vector<8x16xf32>
    %c0_1 = arith.constant 0 : index
    %c0_2 = arith.constant 0 : index
    %1 = vector.load %arg2[%c0_1, %c0_2] : memref<8x1xi32, #tpu.memory_space<vmem>>, vector<8x1xi32>
    %cst = arith.constant dense<0xFF800000> : vector<8xf32>
    %2 = vector.multi_reduction <maximumf>, %0, %cst [1] : vector<8x16xf32> to vector<8xf32>
    %3 = vector.shape_cast %2 : vector<8xf32> to vector<8x1xf32>
    %4 = vector.broadcast %3 : vector<8x1xf32> to vector<8x16xf32>
    %5 = arith.subf %0, %4 : vector<8x16xf32>
    %6 = math.exp %5 : vector<8x16xf32>
    %cst_3 = arith.constant dense<0.000000e+00> : vector<8xf32>
    %7 = vector.multi_reduction <add>, %6, %cst_3 [1] : vector<8x16xf32> to vector<8xf32>
    %8 = vector.shape_cast %7 : vector<8xf32> to vector<8x1xf32>
    %9 = math.log %8 : vector<8x1xf32>
    %10 = tpu.iota {dimensions = array<i32: 1>} : vector<8x16xi32>
    %11 = vector.broadcast %1 : vector<8x1xi32> to vector<8x16xi32>
    %12 = arith.cmpi eq, %10, %11 : vector<8x16xi32>
    %cst_4 = arith.constant 0.000000e+00 : f32
    %13 = vector.broadcast %cst_4 : f32 to vector<8x16xf32>
    %14 = arith.select %12, %5, %13 : vector<8x16xi1>, vector<8x16xf32>
    %cst_5 = arith.constant dense<0.000000e+00> : vector<8xf32>
    %15 = vector.multi_reduction <add>, %14, %cst_5 [1] : vector<8x16xf32> to vector<8xf32>
    %16 = vector.shape_cast %15 : vector<8xf32> to vector<8x1xf32>
    %cst_6 = arith.constant dense<0.000000e+00> : vector<8xf32>
    %17 = vector.multi_reduction <add>, %5, %cst_6 [1] : vector<8x16xf32> to vector<8xf32>
    %18 = vector.shape_cast %17 : vector<8xf32> to vector<8x1xf32>
    %19 = arith.subf %9, %16 : vector<8x1xf32>
    %cst_7 = arith.constant 0.899999976 : f32
    %20 = vector.broadcast %cst_7 : f32 to vector<8x1xf32>
    %21 = arith.mulf %20, %19 : vector<8x1xf32>
    %cst_8 = arith.constant 6.250000e-02 : f32
    %22 = vector.broadcast %cst_8 : f32 to vector<8x1xf32>
    %23 = arith.mulf %18, %22 : vector<8x1xf32>
    %24 = arith.subf %9, %23 : vector<8x1xf32>
    %cst_9 = arith.constant 1.000000e-01 : f32
    %25 = vector.broadcast %cst_9 : f32 to vector<8x1xf32>
    %26 = arith.mulf %25, %24 : vector<8x1xf32>
    %27 = arith.addf %21, %26 : vector<8x1xf32>
    %c8_i32 = arith.constant 8 : i32
    %28 = arith.muli %arg0, %c8_i32 : i32
    %29 = tpu.iota {dimensions = array<i32: 0>} : vector<8x1xi32>
    %30 = vector.broadcast %28 : i32 to vector<8x1xi32>
    %31 = arith.addi %30, %29 : vector<8x1xi32>
    %c20_i32 = arith.constant 20 : i32
    %32 = vector.broadcast %c20_i32 : i32 to vector<8x1xi32>
    %33 = arith.cmpi slt, %31, %32 : vector<8x1xi32>
    %cst_10 = arith.constant 0.000000e+00 : f32
    %34 = vector.broadcast %cst_10 : f32 to vector<8x1xf32>
    %35 = arith.select %33, %27, %34 : vector<8x1xi1>, vector<8x1xf32>
    %cst_11 = arith.constant dense<0.000000e+00> : vector<1xf32>
    %36 = vector.multi_reduction <add>, %35, %cst_11 [0] : vector<8x1xf32> to vector<1xf32>
    %37 = vector.shape_cast %36 : vector<1xf32> to vector<1x1xf32>
    %38 = vector.shape_cast %37 : vector<1x1xf32> to vector<1x1x1xf32>
    %39 = vector.shape_cast %38 : vector<1x1x1xf32> to vector<1x1x1xf32>
    %40 = vector.broadcast %39 : vector<1x1x1xf32> to vector<1x8x128xf32>
    %c0_12 = arith.constant 0 : index
    %c0_13 = arith.constant 0 : index
    %c0_14 = arith.constant 0 : index
    %41 = vector.load %arg3[%c0_12, %c0_13, %c0_14] : memref<1x8x128xf32, #tpu.memory_space<vmem>>, vector<1x8x128xf32>
    tpu.vector_store %arg3[%c0_12, %c0_13, %c0_14], %40 {strides = array<i32>} : memref<1x8x128xf32, #tpu.memory_space<vmem>>, vector<1x8x128xf32>,
    return
  }
  func.func @transform_0(%arg0: i32) -> (i32, i32) {
    %c0_i32 = arith.constant 0 : i32
    %c0_i32_0 = arith.constant 0 : i32
    return %arg0, %c0_i32 : i32, i32
  }
  func.func @transform_1(%arg0: i32) -> (i32, i32) {
    %c0_i32 = arith.constant 0 : i32
    %c0_i32_0 = arith.constant 0 : i32
    return %arg0, %c0_i32 : i32, i32
  }
  func.func @transform_2(%arg0: i32) -> (i32, i32, i32) {
    %c0_i32 = arith.constant 0 : i32
    %c0_i32_0 = arith.constant 0 : i32
    %c0_i32_1 = arith.constant 0 : i32
    return %arg0, %c0_i32, %c0_i32_0 : i32, i32, i32
  }
}

</mosaic_0001>

<llo_original>
// kernel: tpu_custom_call.1
$region0: #{tpu_custom_call.1}
  #allocation0 [shape = 'u32[]', space=smem, size = 0x4, offset = 0x4, fixed_abs, tag = 'smem constant byte address 0x4 - core index']
  #allocation1 [shape = 'u32[144,128]{1,0:T(1,128)}', space=vmem, size = 0x12000, scoped, tag = 'internal scratch']
  %s0 = inlined_call_operand.vmem [shape: f32[20,16], index: 0, kind: input, shape index: {}]
  %s1 = inlined_call_operand.vmem [shape: s32[24,1], index: 1, kind: input, shape index: {}]
  %s2 = inlined_call_operand.hbm [shape: f32[3,8,128], index: 2, kind: output, shape index: {}]
  %s3 = sld [smem:[#allocation0]]
  $region41: #{tpu_custom_call.1} parent=0
    _
  %s5 = ssub.s32 1, %s3
  %s6 = scalar_select 0, %s5, %s3
  $region1: #{tpu_custom_call.1} parent=0
    #allocation2 [shape = 'u8[8192]{0}', space=vmem, size = 0x2000, scoped, tag = 'output window, operand 0']
    #allocation3 [shape = 's32[2]{0}', space=sflag, size = 0x8, scoped, tag = 'scoped memory for tpu_custom_call.1']
    %7 = vsyncpa [#allocation3], 0
    %s8 = scalar_lea.sflag [#allocation3], 1
    %9 = vsyncpa %s8, 0
    loop: start=0, step=1, limit=5
    $region2: #{tpu_custom_call.1} parent=1 // loop_pre_header
      _
    $region3: #{tpu_custom_call.1} parent=1 // loop_header
      %s11 = sphi 0, %s15
      %p12 = scmp.ge.s32.totalorder %s11, 5
      %s21 = sphi 0, %s23
      %s24 = sphi 0, %s21
      %s25 = sphi 0, %s24
      %s41 = sphi 0, %s25
      %s47 = sphi 0, %s49
      %s50 = sphi 0, %s47
      %s51 = sphi 0, %s50
      %s67 = sphi 0, %s51
      %s73 = sphi 0, %s75
      %s76 = sphi 0, %s73
      %s77 = sphi 0, %s76
      %s93 = sphi 0, %s77
    $region4: #{tpu_custom_call.1} parent=1 // loop_header_branch
      %14 = sbr.rel (%p12) target = $region8
    $region5: #{tpu_custom_call.1} parent=1 // loop_body
      %s16 = ssub.s32 %s11, 1
      %s17 = ssub.s32 %s11, 2
      %s18 = sadd.s32 %s11, 1
      %s19 = ssub.s32 %s11, %s18
      %p20 = scmp.eq.s32.totalorder %s19, 0
      %s22 = sadd.s32 %s21, 1
      %s23 = scalar_select %p20, %s21, %s22
      %p26 = pneg %p20
      %p27 = scmp.eq.s32.totalorder %s11, 2
      %p28 = por %p26, %p27
      %p29 = scmp.ne.s32.totalorder %s21, %s24
      %p30 = scmp.eq.s32.totalorder %s11, 0
      %p31 = por %p29, %p30
      %p32 = scmp.ne.s32.totalorder %s21, %s24
      %p33 = scmp.eq.s32.totalorder %s16, 2
      %p34 = por %p32, %p33
      %p35 = scmp.ne.s32.totalorder %s24, %s25
      %p36 = scmp.eq.s32.totalorder %s16, 0
      %p37 = por %p35, %p36
      %p38 = scmp.ne.s32.totalorder %s24, %s25
      %p39 = scmp.eq.s32.totalorder %s17, 2
      %p40 = por %p38, %p39
      %p42 = scmp.ne.s32.totalorder %s25, %s41
      %p43 = scmp.eq.s32.totalorder %s17, 0
      %p44 = por %p42, %p43
      %s45 = ssub.s32 %s11, %s18
      %p46 = scmp.eq.s32.totalorder %s45, 0
      %s48 = sadd.s32 %s47, 1
      %s49 = scalar_select %p46, %s47, %s48
      %p52 = pneg %p46
      %p53 = scmp.eq.s32.totalorder %s11, 2
      %p54 = por %p52, %p53
      %p55 = scmp.ne.s32.totalorder %s47, %s50
      %p56 = scmp.eq.s32.totalorder %s11, 0
      %p57 = por %p55, %p56
      %p58 = scmp.ne.s32.totalorder %s47, %s50
      %p59 = scmp.eq.s32.totalorder %s16, 2
      %p60 = por %p58, %p59
      %p61 = scmp.ne.s32.totalorder %s50, %s51
      %p62 = scmp.eq.s32.totalorder %s16, 0
      %p63 = por %p61, %p62
      %p64 = scmp.ne.s32.totalorder %s50, %s51
      %p65 = scmp.eq.s32.totalorder %s17, 2
      %p66 = por %p64, %p65
      %p68 = scmp.ne.s32.totalorder %s51, %s67
      %p69 = scmp.eq.s32.totalorder %s17, 0
      %p70 = por %p68, %p69
      %s71 = ssub.s32 %s11, %s18
      %p72 = scmp.eq.s32.totalorder %s71, 0
      %s74 = sadd.s32 %s73, 1
      %s75 = scalar_select %p72, %s73, %s74
      %p78 = pneg %p72
      %p79 = scmp.eq.s32.totalorder %s11, 2
      %p80 = por %p78, %p79
      %p81 = scmp.ne.s32.totalorder %s73, %s76
      %p82 = scmp.eq.s32.totalorder %s11, 0
      %p83 = por %p81, %p82
      %p84 = scmp.ne.s32.totalorder %s73, %s76
      %p85 = scmp.eq.s32.totalorder %s16, 2
      %p86 = por %p84, %p85
      %p87 = scmp.ne.s32.totalorder %s76, %s77
      %p88 = scmp.eq.s32.totalorder %s16, 0
      %p89 = por %p87, %p88
      %p90 = scmp.ne.s32.totalorder %s76, %s77
      %p91 = scmp.eq.s32.totalorder %s17, 2
      %p92 = por %p90, %p91
      %p94 = scmp.ne.s32.totalorder %s77, %s93
      %p95 = scmp.eq.s32.totalorder %s17, 0
      %p96 = por %p94, %p95
      %p97 = scmp.le.s32.totalorder 1, %s11
      %p98 = scmp.lt.s32.totalorder %s11, 4
      %p99 = pnand %p97, %p98
      %p100 = pneg %p99
      // Predicated region
      $region9: #{tpu_custom_call.1} parent=5 // pred_check
        _
      $region10: #{tpu_custom_call.1} parent=5 // pred_check_branch
        %102 = sbr.rel (%p99) target = $region12
      $region11: #{tpu_custom_call.1} parent=5 // pred_region
        %s103 = ssub.s32 %s11, 1
      $region12: #{tpu_custom_call.1} parent=5 // pred_fallthru
        _
      %p104 = scmp.lt.s32.totalorder %s11, 3
      // Predicated region
      $region13: #{tpu_custom_call.1} parent=5 // pred_check
        %p105 = pneg %p104
      $region14: #{tpu_custom_call.1} parent=5 // pred_check_branch
        %107 = sbr.rel (%p105) target = $region16
      $region15: #{tpu_custom_call.1} parent=5 // pred_region
        // Predicated region
        $region17: #{tpu_custom_call.1} parent=15 // pred_check
          %p108 = pneg %p31
        $region18: #{tpu_custom_call.1} parent=15 // pred_check_branch
          %110 = sbr.rel (%p108) target = $region20
        $region19: #{tpu_custom_call.1} parent=15 // pred_region
          %p111 = scmp.lt.s32.totalorder %s11, 2
          %s112 = scalar_select %p111, %s11, 2
          %s113 = smul.addr %s112, 8
          %s114 = scalar_lea.vmem %s0, %s113
        $region20: #{tpu_custom_call.1} parent=15 // pred_fallthru
          _
        // Predicated region
        $region21: #{tpu_custom_call.1} parent=15 // pred_check
          %p115 = pneg %p57
        $region22: #{tpu_custom_call.1} parent=15 // pred_check_branch
          %117 = sbr.rel (%p115) target = $region24
        $region23: #{tpu_custom_call.1} parent=15 // pred_region
          %p118 = scmp.lt.s32.totalorder %s11, 2
          %s119 = scalar_select %p118, %s11, 2
          %s120 = smul.addr %s119, 8
          %s121 = scalar_lea.vmem %s1, %s120
        $region24: #{tpu_custom_call.1} parent=15 // pred_fallthru
          _
      $region16: #{tpu_custom_call.1} parent=5 // pred_fallthru
        _
      %p122 = scmp.le.s32.totalorder 1, %s11
      %p123 = scmp.lt.s32.totalorder %s11, 4
      %p124 = pnand %p122, %p123
      %p125 = pneg %p124
      // Predicated region
      $region25: #{tpu_custom_call.1} parent=5 // pred_check
        _
      $region26: #{tpu_custom_call.1} parent=5 // pred_check_branch
        %127 = sbr.rel (%p124) target = $region28
      $region27: #{tpu_custom_call.1} parent=5 // pred_region
        %s128 = ssub.s32 %s11, 1
        %p129 = scmp.lt.s32.totalorder %s16, 2
        %s130 = scalar_select %p129, %s16, 2
        %s131 = smul.addr %s130, 8
        %s132 = scalar_lea.vmem %s0, %s131
        %p133 = pneg %p37
        %p134 = pneg %p34
        %p135 = scmp.lt.s32.totalorder %s16, 2
        %s136 = scalar_select %p135, %s16, 2
        %s137 = smul.addr %s136, 8
        %s138 = scalar_lea.vmem %s1, %s137
        %p139 = pneg %p63
        %p140 = pneg %p60
        %p141 = pneg %p89
        %p142 = pneg %p86
        %s143 = sand.u32 %s76, 1
        %s144 = scalar_lea.sflag [#allocation3], %s143
        %s145 = sand.u32 %s76, 1
        %s146 = smul.addr %s145, 8
        %s147 = scalar_lea.vmem [#allocation2], %s146
        %p148 = scmp.lt.s32.totalorder %s16, 2
        %s149 = scalar_select %p148, %s16, 2
        %s150 = smul.addr %s149, 8
        %s151 = scalar_lea.vmem %s0, %s150
        %p152 = scmp.lt.s32.totalorder %s16, 2
        %s153 = scalar_select %p152, %s16, 2
        %s154 = smul.addr %s153, 8
        %s155 = scalar_lea.vmem %s1, %s154
        %v156 = vld [vmem:[%s151] sm:$0xff]
        %v157 = vld [vmem:[%s155] sm:$0xff]
        %vm158 = vcmask 130048
        %v159 = vsel %vm158, %v156, -inf
        %160 = vmax.xlane.f32.xlu0 %v159
        %v161 = vpop.xlane.xlu0 %160
        %v162 = vsub.f32 %v156, %v161
        %v163 = vmul.f32 %v162, 1.442695
        %v164 = vpow.pop %v163
        %v165 = vsel %vm158, %v164, 0.0
        %166 = vadd.xlane.f32.xlu0 %v165
        %v167 = vpop.xlane.xlu0 %166
        %v168 = vlog2.pop %v167
        %v169 = vmul.f32 %v168, 0.6931472
        %v170 = vlaneseq
        %v171 = vand.u32 %v170, 127
        %172 = vset.pattern.permute.xlu0 0
        %173 = vperm.xlu0 %172, %v157
        %v174 = vpop.permute.xlu0 %173
        %vm175 = vcmp.eq.s32.totalorder %v171, %v174
        %v176 = vsel %vm175, %v162, 0.0
        %v177 = vsel %vm158, %v176, 0.0
        %178 = vadd.xlane.f32.xlu0 %v177
        %v179 = vpop.xlane.xlu0 %178
        %v180 = vsel %vm158, %v162, 0.0
        %181 = vadd.xlane.f32.xlu0 %v180
        %v182 = vpop.xlane.xlu0 %181
        %v183 = vsub.f32 %v169, %v179
        %v184 = vmul.f32 %v183, 0.9
        %v185 = vmul.f32 %v182, 0.0625
        %v186 = vsub.f32 %v169, %v185
        %v187 = vmul.f32 %v186, 0.1
        %v188 = vadd.f32 %v184, %v187
        %s189 = smul.u32 %s16, 8
        %v190 = vlaneseq
        %v191 = vshrl.u32 %v190, 7
        %v192 = vstv %s189
        %v193 = vadd.s32 %v192, %v191
        %vm194 = vcmp.lt.s32.totalorder %v193, 20
        %v195 = vsel %vm194, %v188, 0.0
        %v196 = vrot.slane %v195, 4
        %v197 = vadd.f32 %v195, %v196
        %v198 = vrot.slane %v197, 2
        %v199 = vadd.f32 %v197, %v198
        %v200 = vrot.slane %v199, 1
        %v201 = vadd.f32 %v199, %v200
        %202 = vst [vmem:[%s147] sm:$0xff] %v201
        %s203 = sand.u32 %s76, 1
        %s204 = scalar_lea.sflag [#allocation3], %s203
        %s205 = sand.u32 %s76, 1
        %s206 = smul.addr %s205, 8
        %s207 = scalar_lea.vmem [#allocation2], %s206
        // Predicated region
        $region29: #{tpu_custom_call.1} parent=27 // pred_check
          %p208 = pneg %p86
        $region30: #{tpu_custom_call.1} parent=27 // pred_check_branch
          %210 = sbr.rel (%p208) target = $region32
        $region31: #{tpu_custom_call.1} parent=27 // pred_region
          %s212 = ssub.s32 128, 128
          %213 = vsyncadd %s204, %s212
          %s214 = smul.addr %s16, 128
          %s215 = scalar_lea.hbm %s2, %s214
          %s217 = sshll.u32 %s207, 4
          %s218 = int_to_ptr.vmem [resolvable:$true] %s217
          %220 = dma.vmem_to_hbm [thread:$0]  %s218, 128, %s215, %s204
        $region32: #{tpu_custom_call.1} parent=27 // pred_fallthru
          _
      $region28: #{tpu_custom_call.1} parent=5 // pred_fallthru
        _
      %p221 = scmp.le.s32.totalorder 2, %s11
      // Predicated region
      $region33: #{tpu_custom_call.1} parent=5 // pred_check
        %p222 = pneg %p221
      $region34: #{tpu_custom_call.1} parent=5 // pred_check_branch
        %224 = sbr.rel (%p222) target = $region36
      $region35: #{tpu_custom_call.1} parent=5 // pred_region
        %s225 = ssub.s32 %s11, 2
        // Predicated region
        $region37: #{tpu_custom_call.1} parent=35 // pred_check
          %p226 = pneg %p92
        $region38: #{tpu_custom_call.1} parent=35 // pred_check_branch
          %228 = sbr.rel (%p226) target = $region40
        $region39: #{tpu_custom_call.1} parent=35 // pred_region
          %s229 = sand.u32 %s77, 1
          %s230 = scalar_lea.sflag [#allocation3], %s229
          %s231 = sand.u32 %s77, 1
          %s232 = smul.addr %s231, 8
          %s233 = scalar_lea.vmem [#allocation2], %s232
          %234 = dma.done %s230, 128
        $region40: #{tpu_custom_call.1} parent=35 // pred_fallthru
          _
      $region36: #{tpu_custom_call.1} parent=5 // pred_fallthru
        _
    $region6: #{tpu_custom_call.1} parent=1 // loop_footer
      %s15 = sadd.s32 1, %s11
    $region7: #{tpu_custom_call.1} parent=1 // loop_footer_branch
      %10 = sbr.rel target = $region3
    $region8: #{tpu_custom_call.1} parent=1 // loop_exit
      _
    %235 = vsyncpa [#allocation3], 1
    %s236 = scalar_lea.sflag [#allocation3], 1
    %237 = vsyncpa %s236, 1

</llo_original>
